<compile_context>
chip_gen: v7x
topology: tpu7x:2x2x1
jax: 0.10.0
libtpu: 0.0.40
codegen_flags: <defaults>
</compile_context>

<pallas_src>
import functools

import jax
import jax.numpy as jnp
from jax.experimental import pallas as pl
from jax.experimental.pallas import tpu as pltpu


_INV_SQRT2 = 0.7071067811865476


def _gelu_exact(x):
    # PyTorch default GELU: 0.5 * x * (1 + erf(x / sqrt(2)))
    return 0.5 * x * (1.0 + jax.lax.erf(x * _INV_SQRT2))


def _round_up(n, m):
    return (n + m - 1) // m * m


# ----------------------------------------------------------------------------
# Kernel
# ----------------------------------------------------------------------------
def _detector_kernel(x_ref, w1_ref, w2_ref, w3_ref, b_ref, o_ref,
                     *, hdim_p, mid_p, odim_p):
    cdt = w2_ref.dtype
    # ---- Linear(hdim, hdim)  (eval-mode BatchNorm already folded into w1/b1) ----
    h = jnp.dot(x_ref[...], w1_ref[...], preferred_element_type=jnp.float32)
    h = h + b_ref[0:1, :hdim_p]
    # ---- Dropout(0.2): identity at inference ----
    # ---- GELU (exact erf, f32) ----
    h = _gelu_exact(h)
    # ---- Linear(hdim, 100) + GELU ----
    h2 = jnp.dot(h.astype(cdt), w2_ref[...], preferred_element_type=jnp.float32)
    h2 = _gelu_exact(h2 + b_ref[1:2, :mid_p])
    # ---- Linear(100, odim) ----
    out = jnp.dot(h2.astype(cdt), w3_ref[...], preferred_element_type=jnp.float32)
    out = out + b_ref[2:3, :odim_p]
    o_ref[...] = out.astype(o_ref.dtype)


# ----------------------------------------------------------------------------
# One-time hardware / parameter preparation (outside the hot path)
# ----------------------------------------------------------------------------
def _tpu_config():
    """Static, best-effort hardware query; conservative fallbacks."""
    kind = ""
    try:
        kind = jax.devices()[0].device_kind.lower()
    except Exception:
        pass
    vmem_cap = None
    try:
        vmem_cap = int(pltpu.get_tpu_info().vmem_capacity_bytes)
    except Exception:
        pass
    if vmem_cap is None or vmem_cap <= 0:
        vmem_cap = (128 << 20) if (("v5" in kind) or ("v6" in kind)) else (64 << 20)
    multi_tc = ("v4" in kind) or ("v7" in kind)      # 2 TensorCores per device
    wide_mxu = ("v6" in kind) or ("v7" in kind)      # 2x256x256 MXU
    return vmem_cap, multi_tc, wide_mxu


def prepare_params(params, compute_dtype=jnp.bfloat16):
    """Fold eval-mode BatchNorm into Linear1 and pad everything once."""
    hdim = params["w1"].shape[0]
    mid = params["w2"].shape[1]          # 100
    odim = params["w3"].shape[1]
    hdim_p = _round_up(hdim, 128)
    mid_p = _round_up(mid, 128)
    odim_p = _round_up(odim, 128)

    # Exact fold: BN(x@W1 + b1) = x @ (W1*scale) + ((b1 - rm)*scale + beta)
    eps = jnp.float32(1e-5)
    scale = params["gamma"] * jax.lax.rsqrt(params["rv"].astype(jnp.float32) + eps)
    w1 = params["w1"] * scale
    b1 = (params["b1"] - params["rm"]) * scale + params["beta"]

    cdt = compute_dtype
    w1_p = jnp.zeros((hdim_p, hdim_p), cdt).at[:hdim, :hdim].set(w1.astype(cdt))
    w2_p = jnp.zeros((hdim_p, mid_p), cdt).at[:hdim, :mid].set(params["w2"].astype(cdt))
    w3_p = jnp.zeros((mid_p, odim_p), cdt).at[:mid, :odim].set(params["w3"].astype(cdt))

    # Stack the three bias rows into one lane-dense f32 array (one DMA).
    W = max(hdim_p, mid_p, odim_p)
    b_all = jnp.zeros((3, W), jnp.float32)
    b_all = b_all.at[0, :hdim].set(b1.reshape(-1).astype(jnp.float32))
    b_all = b_all.at[1, :mid].set(params["b2"].reshape(-1).astype(jnp.float32))
    b_all = b_all.at[2, :odim].set(params["b3"].reshape(-1).astype(jnp.float32))

    arrays = dict(w1=w1_p, w2=w2_p, w3=w3_p, b=b_all)
    meta = dict(hdim=hdim, odim=odim)
    return arrays, meta


# ----------------------------------------------------------------------------
# Forward
# ----------------------------------------------------------------------------
@functools.partial(jax.jit, static_argnames=(
    "hdim", "odim", "multi_tc", "wide_mxu", "vmem_cap", "max_block_b",
    "out_dtype"))
def _detector_forward_padded(x, w1_p, w2_p, w3_p, b_all, *, hdim, odim,
                             multi_tc, wide_mxu, vmem_cap, max_block_b,
                             out_dtype):
    B = x.shape[0]
    hdim_p = w1_p.shape[1]
    mid_p = w2_p.shape[1]
    odim_p = w3_p.shape[1]
    W = b_all.shape[1]
    cdt = w1_p.dtype
    wbytes = jnp.dtype(cdt).itemsize
    out_bytes = jnp.dtype(out_dtype).itemsize

    weight_elems = hdim_p * hdim_p + hdim_p * mid_p + mid_p * odim_p
    # Weights/biases are single-buffered (pl.Buffered(1)) -> counted once.
    weight_bytes = weight_elems * wbytes + 3 * W * 4

    # Generation-aware VMEM budget (~80% of physical capacity).
    vmem_budget = int(0.80 * vmem_cap)

    def vmem_needed(block_b):
        return (weight_bytes
                + 2 * block_b * hdim_p * wbytes             # x tile (double buffered)
                + 2 * block_b * odim_p * out_bytes          # out tile (double buffered)
                + block_b * (hdim_p + mid_p + odim_p) * 4   # f32 intermediates
                + (4 << 20))                                # headroom / internal scratch

    # Batch block: 256 on 256-wide-MXU parts (v6e/v7x), 128 on v5e, shrunk
    # until the VMEM estimate clears the per-generation budget.
    bb_cap = max_block_b if max_block_b is not None else (256 if wide_mxu else 128)
    bb = _round_up(min(bb_cap, _round_up(B, 8)), 8)
    while bb > 8 and vmem_needed(bb) > vmem_budget:
        bb = _round_up(bb // 2, 8)
    # TODO(synk): if weights alone exceed the budget, a K-tiled variant with an
    #             f32 accumulator scratch is needed (see header TODO).

    # Force >= 2 grid steps only on multi-TC chips (megacore sharding).
    if multi_tc and B > 8 and _round_up(B, bb) // bb < 2:
        bb = _round_up((B + 1) // 2, 8)

    B_p = _round_up(B, bb)
    grid = (B_p // bb,)

    x_p = jnp.zeros((B_p, hdim_p), cdt).at[:B, :hdim].set(x.astype(cdt))

    # ---------- cost estimate & VMEM limit ----------
    flops = 2 * B_p * weight_elems
    transcendentals = B_p * (hdim_p + mid_p)       # one erf per GELU element
    bytes_accessed = (B_p * hdim_p * wbytes + weight_elems * wbytes
                      + 3 * W * 4 + B_p * odim_p * out_bytes)
    cost = pl.CostEstimate(flops=flops, transcendentals=transcendentals,
                           bytes_accessed=bytes_accessed)
    vmem_limit = int(min(max(vmem_needed(bb), 16 << 20), vmem_budget))

    # ---------- pallas_call ----------
    kernel = functools.partial(_detector_kernel,
                               hdim_p=hdim_p, mid_p=mid_p, odim_p=odim_p)

    def rep(shape):
        # Full-array block, constant index_map across the batch grid:
        # single-buffer it (double-buffering a constant block is pure waste).
        return pl.BlockSpec(shape, lambda i: (0,) * len(shape),
                            pipeline_mode=pl.Buffered(1))

    out_p = pl.pallas_call(
        kernel,
        out_shape=jax.ShapeDtypeStruct((B_p, odim_p), out_dtype),
        grid_spec=pltpu.PrefetchScalarGridSpec(
            num_scalar_prefetch=0,
            grid=grid,
            in_specs=[
                pl.BlockSpec((bb, hdim_p), lambda i: (i, 0)),   # x tile
                rep((hdim_p, hdim_p)),                          # w1 (BN folded)
                rep((hdim_p, mid_p)),                           # w2
                rep((mid_p, odim_p)),                           # w3
                rep((3, W)),                                    # stacked biases (f32)
            ],
            out_specs=pl.BlockSpec((bb, odim_p), lambda i: (i, 0)),
        ),
        compiler_params=pltpu.CompilerParams(
            dimension_semantics=("parallel",),
            vmem_limit_bytes=vmem_limit,
        ),
        cost_estimate=cost,
    )(x_p, w1_p, w2_p, w3_p, b_all)

    return out_p[:B, :odim]


def detector_forward(x, prepared, *, max_block_b=None, out_dtype=None):
    arrays, meta = prepared
    vmem_cap, multi_tc, wide_mxu = _tpu_config()
    odt = jnp.dtype(out_dtype) if out_dtype is not None else jnp.dtype(x.dtype)
    return _detector_forward_padded(
        x, arrays["w1"], arrays["w2"], arrays["w3"], arrays["b"],
        hdim=meta["hdim"], odim=meta["odim"],
        multi_tc=multi_tc, wide_mxu=wide_mxu, vmem_cap=vmem_cap,
        max_block_b=max_block_b, out_dtype=odt)


# ----------------------------------------------------------------------------
# Test harness
# ----------------------------------------------------------------------------
def make_params(key, hdim, odim, mid=100):
    ks = jax.random.split(key, 6)

    def lin(k, fan_in, fan_out):
        bound = 1.0 / jnp.sqrt(fan_in)
        kw, kb = jax.random.split(k)
        w = jax.random.uniform(kw, (fan_in, fan_out), jnp.float32, -bound, bound)
        b = jax.random.uniform(kb, (1, fan_out), jnp.float32, -bound, bound)
        return w, b

    w1, b1 = lin(ks[0], hdim, hdim)
    w2, b2 = lin(ks[1], hdim, mid)
    w3, b3 = lin(ks[2], mid, odim)
    # BatchNorm1d params nudged so the normalization is non-trivial.
    gamma = jnp.ones((1, hdim), jnp.float32) + 0.1 * jax.random.normal(ks[3], (1, hdim))
    beta = 0.1 * jax.random.normal(ks[4], (1, hdim))
    rm = 0.05 * jax.random.normal(ks[5], (1, hdim))
    rv = jnp.ones((1, hdim), jnp.float32)
    return dict(w1=w1, b1=b1, gamma=gamma, beta=beta, rm=rm, rv=rv,
                w2=w2, b2=b2, w3=w3, b3=b3)


def reference_forward(x, p):
    h = x @ p["w1"] + p["b1"]
    h = (h - p["rm"]) * jax.lax.rsqrt(p["rv"] + 1e-5) * p["gamma"] + p["beta"]
    h = _gelu_exact(h)
    h = _gelu_exact(h @ p["w2"] + p["b2"])
    return h @ p["w3"] + p["b3"]


if __name__ == "__main__":
    B, hdim, odim = 16, 32, 8
    key = jax.random.PRNGKey(0)
    kx, kp = jax.random.split(key)
    x = jax.random.normal(kx, (B, hdim), jnp.float32)
    params = make_params(kp, hdim, odim)

    ref = reference_forward(x, params)

    # Exact path (f32 MXU operands): strict parity with the PyTorch-eval math.
    prep_f32 = prepare_params(params, compute_dtype=jnp.float32)
    out_f32 = jax.block_until_ready(detector_forward(x, prep_f32))
    assert out_f32.shape == (B, odim)
    assert jnp.max(jnp.abs(out_f32 - ref)) < 1e-4, "f32 mismatch vs reference"

    # Fast path (bf16 MXU operands, f32 accumulation): looser tolerance.
    prep_bf16 = prepare_params(params, compute_dtype=jnp.bfloat16)
    out_bf16 = jax.block_until_ready(detector_forward(x, prep_bf16))
    assert out_bf16.shape == (B, odim)
    assert jnp.max(jnp.abs(out_bf16 - ref)) < 1e-1, "bf16 mismatch vs reference"

    print("KERNEL_OK")
</pallas_src>

<mosaic_0001>
module attributes {stable_mosaic.version = 11 : i64} {
  func.func @_detector_kernel(%arg0: i32, %arg1: memref<16x128xf32, #tpu.memory_space<vmem>>, %arg2: memref<128x128xf32, #tpu.memory_space<vmem>>, %arg3: memref<128x128xf32, #tpu.memory_space<vmem>>, %arg4: memref<128x128xf32, #tpu.memory_space<vmem>>, %arg5: memref<3x128xf32, #tpu.memory_space<vmem>>, %arg6: memref<16x128xf32, #tpu.memory_space<vmem>>) attributes {dimension_semantics = [#tpu.dimension_semantics<parallel>], iteration_bounds = array<i64: 1>, scalar_prefetch = 0 : i64, scratch_operands = 0 : i64, tpu.core_type = #tpu.core_type<tc>, window_params = [{transform_indices = @transform_0, window_bounds = array<i64: 16, 128>}, {pipeline_mode = #tpu.pipeline_mode<synchronous>, transform_indices = @transform_1, window_bounds = array<i64: 128, 128>}, {pipeline_mode = #tpu.pipeline_mode<synchronous>, transform_indices = @transform_2, window_bounds = array<i64: 128, 128>}, {pipeline_mode = #tpu.pipeline_mode<synchronous>, transform_indices = @transform_3, window_bounds = array<i64: 128, 128>}, {pipeline_mode = #tpu.pipeline_mode<synchronous>, transform_indices = @transform_4, window_bounds = array<i64: 3, 128>}, {transform_indices = @transform_5, window_bounds = array<i64: 16, 128>}]} {
    %c0 = arith.constant 0 : index
    %c0_0 = arith.constant 0 : index
    %0 = vector.load %arg1[%c0, %c0_0] : memref<16x128xf32, #tpu.memory_space<vmem>>, vector<16x128xf32>
    %c0_1 = arith.constant 0 : index
    %c0_2 = arith.constant 0 : index
    %1 = vector.load %arg2[%c0_1, %c0_2] : memref<128x128xf32, #tpu.memory_space<vmem>>, vector<128x128xf32>
    %cst = arith.constant dense<0.000000e+00> : vector<16x128xf32>
    %2 = tpu.matmul %0, %1, %cst {dimension_numbers = #tpu.dot_dimension_numbers<[1], [0], [0], [1], [0, 0, 1, 1], [], []>} : vector<16x128xf32>, vector<128x128xf32>, vector<16x128xf32> -> vector<16x128xf32>
    %c0_3 = arith.constant 0 : index
    %c0_4 = arith.constant 0 : index
    %3 = vector.load %arg5[%c0_3, %c0_4] : memref<3x128xf32, #tpu.memory_space<vmem>>, vector<1x128xf32>
    %4 = vector.broadcast %3 : vector<1x128xf32> to vector<16x128xf32>
    %5 = arith.addf %2, %4 : vector<16x128xf32>
    %cst_5 = arith.constant 5.000000e-01 : f32
    %6 = vector.broadcast %cst_5 : f32 to vector<16x128xf32>
    %7 = arith.mulf %6, %5 : vector<16x128xf32>
    %cst_6 = arith.constant 0.707106769 : f32
    %8 = vector.broadcast %cst_6 : f32 to vector<16x128xf32>
    %9 = arith.mulf %5, %8 : vector<16x128xf32>
    %10 = math.erf %9 : vector<16x128xf32>
    %cst_7 = arith.constant 1.000000e+00 : f32
    %11 = vector.broadcast %cst_7 : f32 to vector<16x128xf32>
    %12 = arith.addf %11, %10 : vector<16x128xf32>
    %13 = arith.mulf %7, %12 : vector<16x128xf32>
    %c0_8 = arith.constant 0 : index
    %c0_9 = arith.constant 0 : index
    %14 = vector.load %arg3[%c0_8, %c0_9] : memref<128x128xf32, #tpu.memory_space<vmem>>, vector<128x128xf32>
    %cst_10 = arith.constant dense<0.000000e+00> : vector<16x128xf32>
    %15 = tpu.matmul %13, %14, %cst_10 {dimension_numbers = #tpu.dot_dimension_numbers<[1], [0], [0], [1], [0, 0, 1, 1], [], []>} : vector<16x128xf32>, vector<128x128xf32>, vector<16x128xf32> -> vector<16x128xf32>
    %c1 = arith.constant 1 : index
    %c0_11 = arith.constant 0 : index
    %16 = vector.load %arg5[%c1, %c0_11] : memref<3x128xf32, #tpu.memory_space<vmem>>, vector<1x128xf32>
    %17 = vector.broadcast %16 : vector<1x128xf32> to vector<16x128xf32>
    %18 = arith.addf %15, %17 : vector<16x128xf32>
    %cst_12 = arith.constant 5.000000e-01 : f32
    %19 = vector.broadcast %cst_12 : f32 to vector<16x128xf32>
    %20 = arith.mulf %19, %18 : vector<16x128xf32>
    %cst_13 = arith.constant 0.707106769 : f32
    %21 = vector.broadcast %cst_13 : f32 to vector<16x128xf32>
    %22 = arith.mulf %18, %21 : vector<16x128xf32>
    %23 = math.erf %22 : vector<16x128xf32>
    %cst_14 = arith.constant 1.000000e+00 : f32
    %24 = vector.broadcast %cst_14 : f32 to vector<16x128xf32>
    %25 = arith.addf %24, %23 : vector<16x128xf32>
    %26 = arith.mulf %20, %25 : vector<16x128xf32>
    %c0_15 = arith.constant 0 : index
    %c0_16 = arith.constant 0 : index
    %27 = vector.load %arg4[%c0_15, %c0_16] : memref<128x128xf32, #tpu.memory_space<vmem>>, vector<128x128xf32>
    %cst_17 = arith.constant dense<0.000000e+00> : vector<16x128xf32>
    %28 = tpu.matmul %26, %27, %cst_17 {dimension_numbers = #tpu.dot_dimension_numbers<[1], [0], [0], [1], [0, 0, 1, 1], [], []>} : vector<16x128xf32>, vector<128x128xf32>, vector<16x128xf32> -> vector<16x128xf32>
    %c2 = arith.constant 2 : index
    %c0_18 = arith.constant 0 : index
    %29 = vector.load %arg5[%c2, %c0_18] : memref<3x128xf32, #tpu.memory_space<vmem>>, vector<1x128xf32>
    %30 = vector.broadcast %29 : vector<1x128xf32> to vector<16x128xf32>
    %31 = arith.addf %28, %30 : vector<16x128xf32>
    %c0_19 = arith.constant 0 : index
    %c0_20 = arith.constant 0 : index
    %32 = vector.load %arg6[%c0_19, %c0_20] : memref<16x128xf32, #tpu.memory_space<vmem>>, vector<16x128xf32>
    tpu.vector_store %arg6[%c0_19, %c0_20], %31 {strides = array<i32>} : memref<16x128xf32, #tpu.memory_space<vmem>>, vector<16x128xf32>,
    return
  }
  func.func @transform_0(%arg0: i32) -> (i32, i32) {
    %c0_i32 = arith.constant 0 : i32
    %c0_i32_0 = arith.constant 0 : i32
    return %arg0, %c0_i32 : i32, i32
  }
  func.func @transform_1(%arg0: i32) -> (i32, i32) {
    %c0_i32 = arith.constant 0 : i32
    %c0_i32_0 = arith.constant 0 : i32
    %c0_i32_1 = arith.constant 0 : i32
    return %c0_i32, %c0_i32_0 : i32, i32
  }
  func.func @transform_2(%arg0: i32) -> (i32, i32) {
    %c0_i32 = arith.constant 0 : i32
    %c0_i32_0 = arith.constant 0 : i32
    %c0_i32_1 = arith.constant 0 : i32
    return %c0_i32, %c0_i32_0 : i32, i32
  }
  func.func @transform_3(%arg0: i32) -> (i32, i32) {
    %c0_i32 = arith.constant 0 : i32
    %c0_i32_0 = arith.constant 0 : i32
    %c0_i32_1 = arith.constant 0 : i32
    return %c0_i32, %c0_i32_0 : i32, i32
  }
  func.func @transform_4(%arg0: i32) -> (i32, i32) {
    %c0_i32 = arith.constant 0 : i32
    %c0_i32_0 = arith.constant 0 : i32
    %c0_i32_1 = arith.constant 0 : i32
    return %c0_i32, %c0_i32_0 : i32, i32
  }
  func.func @transform_5(%arg0: i32) -> (i32, i32) {
    %c0_i32 = arith.constant 0 : i32
    %c0_i32_0 = arith.constant 0 : i32
    return %arg0, %c0_i32 : i32, i32
  }
}

</mosaic_0001>

<llo_original>
// kernel: _detector_forward_padded.1
$region0: #{_detector_forward_padded.1}
  #allocation0 [shape = 'u32[]', space=smem, size = 0x4, offset = 0x4, fixed_abs, tag = 'smem constant byte address 0x4 - core index']
  #allocation1 [shape = 'u32[144,128]{1,0:T(1,128)}', space=vmem, size = 0x12000, scoped, tag = 'internal scratch']
  %s0 = inlined_call_operand.vmem [shape: f32[16,128], index: 0, kind: input, shape index: {}]
  %s1 = inlined_call_operand.hbm [shape: f32[128,128], index: 1, kind: input, shape index: {}]
  %s2 = inlined_call_operand.hbm [shape: f32[128,128], index: 2, kind: input, shape index: {}]
  %s3 = inlined_call_operand.hbm [shape: f32[128,128], index: 3, kind: input, shape index: {}]
  %s4 = inlined_call_operand.vmem [shape: f32[3,128], index: 4, kind: input, shape index: {}]
  %s5 = inlined_call_operand.vmem [shape: f32[16,128], index: 5, kind: output, shape index: {}]
  %s6 = sld [smem:[#allocation0]]
  $region42: #{_detector_forward_padded.1} parent=0
    _
  %s8 = ssub.s32 1, %s6
  %s9 = scalar_select 0, %s8, %s6
  $region1: #{_detector_forward_padded.1} parent=0
    #allocation2 [shape = 'u8[65536]{0}', space=vmem, size = 0x10000, scoped, tag = 'input window, operand 1, single buffered']
    #allocation3 [shape = 's32[1]{0}', space=sflag, size = 0x4, scoped, tag = 'scoped memory for _detector_forward_padded.1']
    #allocation4 [shape = 'u8[65536]{0}', space=vmem, size = 0x10000, scoped, tag = 'input window, operand 2, single buffered']
    #allocation5 [shape = 's32[1]{0}', space=sflag, size = 0x4, scoped, tag = 'scoped memory for _detector_forward_padded.1']
    #allocation6 [shape = 'u8[65536]{0}', space=vmem, size = 0x10000, scoped, tag = 'input window, operand 3, single buffered']
    %10 = vsyncpa [#allocation3], 0
    %11 = vsyncpa [#allocation5], 0
    // Predicated region
    $region2: #{_detector_forward_padded.1} parent=1 // pred_check
      _
    $region3: #{_detector_forward_padded.1} parent=1 // pred_check_branch
      %13 = sbr.rel (0) target = $region5
    $region4: #{_detector_forward_padded.1} parent=1 // pred_region
      _
    $region5: #{_detector_forward_padded.1} parent=1 // pred_fallthru
      _
    // Predicated region
    $region6: #{_detector_forward_padded.1} parent=1 // pred_check
      _
    $region7: #{_detector_forward_padded.1} parent=1 // pred_check_branch
      %15 = sbr.rel (0) target = $region9
    $region8: #{_detector_forward_padded.1} parent=1 // pred_region
      %s17 = ssub.s32 2048, 2048
      %18 = vsyncadd [#allocation3], %s17
      %s19 = sshll.u32 [#allocation2], 4
      %s20 = int_to_ptr.vmem [resolvable:$true] %s19
      %25 = dma.hbm_to_vmem [thread:$0]  %s1, 2048, %s20, [#allocation3], 128, 128, 8
    $region9: #{_detector_forward_padded.1} parent=1 // pred_fallthru
      _
    // Predicated region
    $region10: #{_detector_forward_padded.1} parent=1 // pred_check
      _
    $region11: #{_detector_forward_padded.1} parent=1 // pred_check_branch
      %27 = sbr.rel (0) target = $region13
    $region12: #{_detector_forward_padded.1} parent=1 // pred_region
      %s29 = ssub.s32 2048, 2048
      %30 = vsyncadd [#allocation5], %s29
      %s31 = sshll.u32 [#allocation4], 4
      %s32 = int_to_ptr.vmem [resolvable:$true] %s31
      %37 = dma.hbm_to_vmem [thread:$0]  %s2, 2048, %s32, [#allocation5], 128, 128, 8
    $region13: #{_detector_forward_padded.1} parent=1 // pred_fallthru
      _
    // Predicated region
    $region14: #{_detector_forward_padded.1} parent=1 // pred_check
      _
    $region15: #{_detector_forward_padded.1} parent=1 // pred_check_branch
      %39 = sbr.rel (0) target = $region17
    $region16: #{_detector_forward_padded.1} parent=1 // pred_region
      %s41 = ssub.s32 2048, 2048
      %42 = vsyncadd [#allocation5], %s41
      %s43 = sshll.u32 [#allocation6], 4
      %s44 = int_to_ptr.vmem [resolvable:$true] %s43
      %49 = dma.hbm_to_vmem [thread:$0]  %s3, 2048, %s44, [#allocation5], 128, 128, 8
    $region17: #{_detector_forward_padded.1} parent=1 // pred_fallthru
      _
    // Predicated region
    $region18: #{_detector_forward_padded.1} parent=1 // pred_check
      _
    $region19: #{_detector_forward_padded.1} parent=1 // pred_check_branch
      %51 = sbr.rel (0) target = $region21
    $region20: #{_detector_forward_padded.1} parent=1 // pred_region
      _
    $region21: #{_detector_forward_padded.1} parent=1 // pred_fallthru
      _
    // Predicated region
    $region22: #{_detector_forward_padded.1} parent=1 // pred_check
      _
    $region23: #{_detector_forward_padded.1} parent=1 // pred_check_branch
      %53 = sbr.rel (0) target = $region25
    $region24: #{_detector_forward_padded.1} parent=1 // pred_region
      %54 = dma.done [#allocation3], 2048
    $region25: #{_detector_forward_padded.1} parent=1 // pred_fallthru
      _
    // Predicated region
    $region26: #{_detector_forward_padded.1} parent=1 // pred_check
      _
    $region27: #{_detector_forward_padded.1} parent=1 // pred_check_branch
      %56 = sbr.rel (0) target = $region29
    $region28: #{_detector_forward_padded.1} parent=1 // pred_region
      %57 = dma.done [#allocation5], 2048
    $region29: #{_detector_forward_padded.1} parent=1 // pred_fallthru
      _
    // Predicated region
    $region30: #{_detector_forward_padded.1} parent=1 // pred_check
      _
    $region31: #{_detector_forward_padded.1} parent=1 // pred_check_branch
      %59 = sbr.rel (0) target = $region33
    $region32: #{_detector_forward_padded.1} parent=1 // pred_region
      %60 = dma.done [#allocation5], 2048
    $region33: #{_detector_forward_padded.1} parent=1 // pred_fallthru
      _
    %v61 = vld [vmem:[%s0] sm:$0xff]
    %v62 = vld [vmem:[%s0 + $0x8] sm:$0xff]
    %v63 = vld [vmem:[#allocation2] sm:$0xff]
    %v64 = vld [vmem:[#allocation2 + $0x8] sm:$0xff]
    %v65 = vld [vmem:[#allocation2 + $0x10] sm:$0xff]
    %v66 = vld [vmem:[#allocation2 + $0x18] sm:$0xff]
    %v67 = vld [vmem:[#allocation2 + $0x20] sm:$0xff]
    %v68 = vld [vmem:[#allocation2 + $0x28] sm:$0xff]
    %v69 = vld [vmem:[#allocation2 + $0x30] sm:$0xff]
    %v70 = vld [vmem:[#allocation2 + $0x38] sm:$0xff]
    %v71 = vld [vmem:[#allocation2 + $0x40] sm:$0xff]
    %v72 = vld [vmem:[#allocation2 + $0x48] sm:$0xff]
    %v73 = vld [vmem:[#allocation2 + $0x50] sm:$0xff]
    %v74 = vld [vmem:[#allocation2 + $0x58] sm:$0xff]
    %v75 = vld [vmem:[#allocation2 + $0x60] sm:$0xff]
    %v76 = vld [vmem:[#allocation2 + $0x68] sm:$0xff]
    %v77 = vld [vmem:[#allocation2 + $0x70] sm:$0xff]
    %v78 = vld [vmem:[#allocation2 + $0x78] sm:$0xff]
    %v79 = vld [vmem:[%s4] sm:$0x1]
    %v80 = vlaneseq
    %v81 = vshrl.u32 %v80, 7
    %v82 = vsub.s32 0, %v81
    %v83 = vrot.slane %v79, %v82
    %84 = vmatprep.subr.mxu0 0.0
    %85 = vmatpush1.msra.mxu0 %v63
    %86 = vmatprep.subr.mxu0 0.0
    %87 = vmatpush1.msra.mxu0 %v64
    %88 = vmatprep.subr.mxu0 0.0
    %89 = vmatpush1.msra.mxu0 %v65
    %90 = vmatprep.subr.mxu0 0.0
    %91 = vmatpush1.msra.mxu0 %v66
    %92 = vmatprep.subr.mxu0 0.0
    %93 = vmatpush1.msra.mxu0 %v67
    %94 = vmatprep.subr.mxu0 0.0
    %95 = vmatpush1.msra.mxu0 %v68
    %96 = vmatprep.subr.mxu0 0.0
    %97 = vmatpush1.msra.mxu0 %v69
    %98 = vmatprep.subr.mxu0 0.0
    %99 = vmatpush1.msra.mxu0 %v70
    %100 = vmatprep.subr.mxu0 0.0
    %101 = vmatpush1.msra.mxu0 %v71
    %102 = vmatprep.subr.mxu0 0.0
    %103 = vmatpush1.msra.mxu0 %v72
    %104 = vmatprep.subr.mxu0 0.0
    %105 = vmatpush1.msra.mxu0 %v73
    %106 = vmatprep.subr.mxu0 0.0
    %107 = vmatpush1.msra.mxu0 %v74
    %108 = vmatprep.subr.mxu0 0.0
    %109 = vmatpush1.msra.mxu0 %v75
    %110 = vmatprep.subr.mxu0 0.0
    %111 = vmatpush1.msra.mxu0 %v76
    %112 = vmatprep.subr.mxu0 0.0
    %113 = vmatpush1.msra.mxu0 %v77
    %114 = vmatprep.subr.mxu0 0.0
    %115 = vmatpush1.msra.mxu0 %v78
    %116 = vmatprep.subr.mxu0 0.0
    %117 = vmatpush1.msra.mxu0 0.0
    %118 = vmatprep.subr.mxu0 0.0
    %119 = vmatpush1.msra.mxu0 0.0
    %120 = vmatprep.subr.mxu0 0.0
    %121 = vmatpush1.msra.mxu0 0.0
    %122 = vmatprep.subr.mxu0 0.0
    %123 = vmatpush1.msra.mxu0 0.0
    %124 = vmatprep.subr.mxu0 0.0
    %125 = vmatpush1.msra.mxu0 0.0
    %126 = vmatprep.subr.mxu0 0.0
    %127 = vmatpush1.msra.mxu0 0.0
    %128 = vmatprep.subr.mxu0 0.0
    %129 = vmatpush1.msra.mxu0 0.0
    %130 = vmatprep.subr.mxu0 0.0
    %131 = vmatpush1.msra.mxu0 0.0
    %132 = vmatprep.subr.mxu0 0.0
    %133 = vmatpush1.msra.mxu0 0.0
    %134 = vmatprep.subr.mxu0 0.0
    %135 = vmatpush1.msra.mxu0 0.0
    %136 = vmatprep.subr.mxu0 0.0
    %137 = vmatpush1.msra.mxu0 0.0
    %138 = vmatprep.subr.mxu0 0.0
    %139 = vmatpush1.msra.mxu0 0.0
    %140 = vmatprep.subr.mxu0 0.0
    %141 = vmatpush1.msra.mxu0 0.0
    %142 = vmatprep.subr.mxu0 0.0
    %143 = vmatpush1.msra.mxu0 0.0
    %144 = vmatprep.subr.mxu0 0.0
    %145 = vmatpush1.msra.mxu0 0.0
    %146 = vmatprep.subr.mxu0 0.0
    %147 = vmatpush1.msra.mxu0 0.0
    %148 = vmatprep.mubr.f32.mxu0 0.0
    %149 = vmatmul.mubr.f32.gmra.mrb[0].mxu0 %v61
    %v150 = vpop.f32.mrb[0].mxu0
    %v151 = vadd.f32 %v83, %v150
    %v152 = vpop.f32.mrb[0].mxu0
    %153 = vmatprep.mubr.f32.mxu0 0.0
    %154 = vmatmul.mubr.f32.gmra.mrb[0].mxu0 %v62
    %v155 = vpop.f32.mrb[0].mxu0
    %v156 = vadd.f32 %v83, %v155
    %v157 = vpop.f32.mrb[0].mxu0
    %158 = vdwg.mxu0
    %v159 = vmul.f32 %v151, 0.5
    %v160 = vmul.f32 %v156, 0.5
    %v161 = vmul.f32 %v151, 0.70710677
    %v162 = vmul.f32 %v156, 0.70710677
    %v163 = verf.f32.pop %v161
    %v164 = verf.f32.pop %v162
    %v165 = vadd.f32 %v163, 1.0
    %v166 = vadd.f32 %v164, 1.0
    %v167 = vmul.f32 %v159, %v165
    %v168 = vmul.f32 %v160, %v166
    %v169 = vld [vmem:[#allocation4] sm:$0xff]
    %v170 = vld [vmem:[#allocation4 + $0x8] sm:$0xff]
    %v171 = vld [vmem:[#allocation4 + $0x10] sm:$0xff]
    %v172 = vld [vmem:[#allocation4 + $0x18] sm:$0xff]
    %v173 = vld [vmem:[#allocation4 + $0x20] sm:$0xff]
    %v174 = vld [vmem:[#allocation4 + $0x28] sm:$0xff]
    %v175 = vld [vmem:[#allocation4 + $0x30] sm:$0xff]
    %v176 = vld [vmem:[#allocation4 + $0x38] sm:$0xff]
    %v177 = vld [vmem:[#allocation4 + $0x40] sm:$0xff]
    %v178 = vld [vmem:[#allocation4 + $0x48] sm:$0xff]
    %v179 = vld [vmem:[#allocation4 + $0x50] sm:$0xff]
    %v180 = vld [vmem:[#allocation4 + $0x58] sm:$0xff]
    %v181 = vld [vmem:[#allocation4 + $0x60] sm:$0xff]
    %v182 = vld [vmem:[#allocation4 + $0x68] sm:$0xff]
    %v183 = vld [vmem:[#allocation4 + $0x70] sm:$0xff]
    %v184 = vld [vmem:[#allocation4 + $0x78] sm:$0xff]
    %v185 = vld [vmem:[%s4 + $0x1] sm:$0x1]
    %v186 = vlaneseq
    %v187 = vshrl.u32 %v186, 7
    %v188 = vsub.s32 0, %v187
    %v189 = vrot.slane %v185, %v188
    %190 = vmatprep.subr.mxu0 0.0
    %191 = vmatpush1.msra.mxu0 %v169
    %192 = vmatprep.subr.mxu0 0.0
    %193 = vmatpush1.msra.mxu0 %v170
    %194 = vmatprep.subr.mxu0 0.0
    %195 = vmatpush1.msra.mxu0 %v171
    %196 = vmatprep.subr.mxu0 0.0
    %197 = vmatpush1.msra.mxu0 %v172
    %198 = vmatprep.subr.mxu0 0.0
    %199 = vmatpush1.msra.mxu0 %v173
    %200 = vmatprep.subr.mxu0 0.0
    %201 = vmatpush1.msra.mxu0 %v174
    %202 = vmatprep.subr.mxu0 0.0
    %203 = vmatpush1.msra.mxu0 %v175
    %204 = vmatprep.subr.mxu0 0.0
    %205 = vmatpush1.msra.mxu0 %v176
    %206 = vmatprep.subr.mxu0 0.0
    %207 = vmatpush1.msra.mxu0 %v177
    %208 = vmatprep.subr.mxu0 0.0
    %209 = vmatpush1.msra.mxu0 %v178
    %210 = vmatprep.subr.mxu0 0.0
    %211 = vmatpush1.msra.mxu0 %v179
    %212 = vmatprep.subr.mxu0 0.0
    %213 = vmatpush1.msra.mxu0 %v180
    %214 = vmatprep.subr.mxu0 0.0
    %215 = vmatpush1.msra.mxu0 %v181
    %216 = vmatprep.subr.mxu0 0.0
    %217 = vmatpush1.msra.mxu0 %v182
    %218 = vmatprep.subr.mxu0 0.0
    %219 = vmatpush1.msra.mxu0 %v183
    %220 = vmatprep.subr.mxu0 0.0
    %221 = vmatpush1.msra.mxu0 %v184
    %222 = vmatprep.subr.mxu0 0.0
    %223 = vmatpush1.msra.mxu0 0.0
    %224 = vmatprep.subr.mxu0 0.0
    %225 = vmatpush1.msra.mxu0 0.0
    %226 = vmatprep.subr.mxu0 0.0
    %227 = vmatpush1.msra.mxu0 0.0
    %228 = vmatprep.subr.mxu0 0.0
    %229 = vmatpush1.msra.mxu0 0.0
    %230 = vmatprep.subr.mxu0 0.0
    %231 = vmatpush1.msra.mxu0 0.0
    %232 = vmatprep.subr.mxu0 0.0
    %233 = vmatpush1.msra.mxu0 0.0
    %234 = vmatprep.subr.mxu0 0.0
    %235 = vmatpush1.msra.mxu0 0.0
    %236 = vmatprep.subr.mxu0 0.0
    %237 = vmatpush1.msra.mxu0 0.0
    %238 = vmatprep.subr.mxu0 0.0
    %239 = vmatpush1.msra.mxu0 0.0
    %240 = vmatprep.subr.mxu0 0.0
    %241 = vmatpush1.msra.mxu0 0.0
    %242 = vmatprep.subr.mxu0 0.0
    %243 = vmatpush1.msra.mxu0 0.0
    %244 = vmatprep.subr.mxu0 0.0
    %245 = vmatpush1.msra.mxu0 0.0
    %246 = vmatprep.subr.mxu0 0.0
    %247 = vmatpush1.msra.mxu0 0.0
    %248 = vmatprep.subr.mxu0 0.0
    %249 = vmatpush1.msra.mxu0 0.0
    %250 = vmatprep.subr.mxu0 0.0
    %251 = vmatpush1.msra.mxu0 0.0
    %252 = vmatprep.subr.mxu0 0.0
    %253 = vmatpush1.msra.mxu0 0.0
    %254 = vmatprep.mubr.f32.mxu0 0.0
    %255 = vmatmul.mubr.f32.gmra.mrb[0].mxu0 %v167
    %v256 = vpop.f32.mrb[0].mxu0
    %v257 = vadd.f32 %v189, %v256
    %v258 = vpop.f32.mrb[0].mxu0
    %259 = vmatprep.mubr.f32.mxu0 0.0
    %260 = vmatmul.mubr.f32.gmra.mrb[0].mxu0 %v168
    %v261 = vpop.f32.mrb[0].mxu0
    %v262 = vadd.f32 %v189, %v261
    %v263 = vpop.f32.mrb[0].mxu0
    %264 = vdwg.mxu0
    %v265 = vmul.f32 %v257, 0.5
    %v266 = vmul.f32 %v262, 0.5
    %v267 = vmul.f32 %v257, 0.70710677
    %v268 = vmul.f32 %v262, 0.70710677
    %v269 = verf.f32.pop %v267
    %v270 = verf.f32.pop %v268
    %v271 = vadd.f32 %v269, 1.0
    %v272 = vadd.f32 %v270, 1.0
    %v273 = vmul.f32 %v265, %v271
    %v274 = vmul.f32 %v266, %v272
    %v275 = vld [vmem:[#allocation6] sm:$0xff]
    %v276 = vld [vmem:[#allocation6 + $0x8] sm:$0xff]
    %v277 = vld [vmem:[#allocation6 + $0x10] sm:$0xff]
    %v278 = vld [vmem:[#allocation6 + $0x18] sm:$0xff]
    %v279 = vld [vmem:[#allocation6 + $0x20] sm:$0xff]
    %v280 = vld [vmem:[#allocation6 + $0x28] sm:$0xff]
    %v281 = vld [vmem:[#allocation6 + $0x30] sm:$0xff]
    %v282 = vld [vmem:[#allocation6 + $0x38] sm:$0xff]
    %v283 = vld [vmem:[#allocation6 + $0x40] sm:$0xff]
    %v284 = vld [vmem:[#allocation6 + $0x48] sm:$0xff]
    %v285 = vld [vmem:[#allocation6 + $0x50] sm:$0xff]
    %v286 = vld [vmem:[#allocation6 + $0x58] sm:$0xff]
    %v287 = vld [vmem:[#allocation6 + $0x60] sm:$0xff]
    %v288 = vld [vmem:[#allocation6 + $0x68] sm:$0xff]
    %v289 = vld [vmem:[#allocation6 + $0x70] sm:$0xff]
    %v290 = vld [vmem:[#allocation6 + $0x78] sm:$0xff]
    %v291 = vld [vmem:[%s4 + $0x2] sm:$0x1]
    %v292 = vlaneseq
    %v293 = vshrl.u32 %v292, 7
    %v294 = vsub.s32 0, %v293
    %v295 = vrot.slane %v291, %v294
    %296 = vmatprep.subr.mxu0 0.0
    %297 = vmatpush1.msra.mxu0 %v275
    %298 = vmatprep.subr.mxu0 0.0
    %299 = vmatpush1.msra.mxu0 %v276
    %300 = vmatprep.subr.mxu0 0.0
    %301 = vmatpush1.msra.mxu0 %v277
    %302 = vmatprep.subr.mxu0 0.0
    %303 = vmatpush1.msra.mxu0 %v278
    %304 = vmatprep.subr.mxu0 0.0
    %305 = vmatpush1.msra.mxu0 %v279
    %306 = vmatprep.subr.mxu0 0.0
    %307 = vmatpush1.msra.mxu0 %v280
    %308 = vmatprep.subr.mxu0 0.0
    %309 = vmatpush1.msra.mxu0 %v281
    %310 = vmatprep.subr.mxu0 0.0
    %311 = vmatpush1.msra.mxu0 %v282
    %312 = vmatprep.subr.mxu0 0.0
    %313 = vmatpush1.msra.mxu0 %v283
    %314 = vmatprep.subr.mxu0 0.0
    %315 = vmatpush1.msra.mxu0 %v284
    %316 = vmatprep.subr.mxu0 0.0
    %317 = vmatpush1.msra.mxu0 %v285
    %318 = vmatprep.subr.mxu0 0.0
    %319 = vmatpush1.msra.mxu0 %v286
    %320 = vmatprep.subr.mxu0 0.0
    %321 = vmatpush1.msra.mxu0 %v287
    %322 = vmatprep.subr.mxu0 0.0
    %323 = vmatpush1.msra.mxu0 %v288
    %324 = vmatprep.subr.mxu0 0.0
    %325 = vmatpush1.msra.mxu0 %v289
    %326 = vmatprep.subr.mxu0 0.0
    %327 = vmatpush1.msra.mxu0 %v290
    %328 = vmatprep.subr.mxu0 0.0
    %329 = vmatpush1.msra.mxu0 0.0
    %330 = vmatprep.subr.mxu0 0.0
    %331 = vmatpush1.msra.mxu0 0.0
    %332 = vmatprep.subr.mxu0 0.0
    %333 = vmatpush1.msra.mxu0 0.0
    %334 = vmatprep.subr.mxu0 0.0
    %335 = vmatpush1.msra.mxu0 0.0
    %336 = vmatprep.subr.mxu0 0.0
    %337 = vmatpush1.msra.mxu0 0.0
    %338 = vmatprep.subr.mxu0 0.0
    %339 = vmatpush1.msra.mxu0 0.0
    %340 = vmatprep.subr.mxu0 0.0
    %341 = vmatpush1.msra.mxu0 0.0
    %342 = vmatprep.subr.mxu0 0.0
    %343 = vmatpush1.msra.mxu0 0.0
    %344 = vmatprep.subr.mxu0 0.0
    %345 = vmatpush1.msra.mxu0 0.0
    %346 = vmatprep.subr.mxu0 0.0
    %347 = vmatpush1.msra.mxu0 0.0
    %348 = vmatprep.subr.mxu0 0.0
    %349 = vmatpush1.msra.mxu0 0.0
    %350 = vmatprep.subr.mxu0 0.0
    %351 = vmatpush1.msra.mxu0 0.0
    %352 = vmatprep.subr.mxu0 0.0
    %353 = vmatpush1.msra.mxu0 0.0
    %354 = vmatprep.subr.mxu0 0.0
    %355 = vmatpush1.msra.mxu0 0.0
    %356 = vmatprep.subr.mxu0 0.0
    %357 = vmatpush1.msra.mxu0 0.0
    %358 = vmatprep.subr.mxu0 0.0
    %359 = vmatpush1.msra.mxu0 0.0
    %360 = vmatprep.mubr.f32.mxu0 0.0
    %361 = vmatmul.mubr.f32.gmra.mrb[0].mxu0 %v273
    %v362 = vpop.f32.mrb[0].mxu0
    %v363 = vadd.f32 %v295, %v362
    %v364 = vpop.f32.mrb[0].mxu0
    %365 = vmatprep.mubr.f32.mxu0 0.0
    %366 = vmatmul.mubr.f32.gmra.mrb[0].mxu0 %v274
    %v367 = vpop.f32.mrb[0].mxu0
    %v368 = vadd.f32 %v295, %v367
    %v369 = vpop.f32.mrb[0].mxu0
    %370 = vdwg.mxu0
    %371 = vst [vmem:[%s5] sm:$0xff] %v363
    %372 = vst [vmem:[%s5 + $0x8] sm:$0xff] %v368
    // Predicated region
    $region34: #{_detector_forward_padded.1} parent=1 // pred_check
      _
    $region35: #{_detector_forward_padded.1} parent=1 // pred_check_branch
      %374 = sbr.rel (0) target = $region37
    $region36: #{_detector_forward_padded.1} parent=1 // pred_region
      _
    $region37: #{_detector_forward_padded.1} parent=1 // pred_fallthru
      _
    // Predicated region
    $region38: #{_detector_forward_padded.1} parent=1 // pred_check
      _
    $region39: #{_detector_forward_padded.1} parent=1 // pred_check_branch
      %376 = sbr.rel (0) target = $region41
    $region40: #{_detector_forward_padded.1} parent=1 // pred_region
      _
    $region41: #{_detector_forward_padded.1} parent=1 // pred_fallthru
      _
    %377 = vsyncpa [#allocation3], 1
    %378 = vsyncpa [#allocation5], 1

</llo_original>
